<compile_context>
chip_gen: v5e
topology: v5e:2x2
jax: 0.10.0
libtpu: 0.0.40
codegen_flags: <defaults>
</compile_context>

<pallas_src>
import functools

import jax
import jax.numpy as jnp
from jax import lax
from jax.experimental import pallas as pl
from jax.experimental.pallas import tpu as pltpu

_EPS_SQ = 1e-16  # clamp on squared row norm (PyTorch clamps the norm product at 1e-8)


def _ntxent_kernel(zr_ref, zc_ref, zp_ref, loss_ref, denom_acc,
                   *, inv_temp, partner_shift, use_bf16):
    i = pl.program_id(0)           # row tile
    j = pl.program_id(1)           # column tile (reduction axis, innermost)
    nj = pl.num_programs(1)

    # First grid step: zero the resident scalar-loss output block.
    @pl.when((i == 0) & (j == 0))
    def _():
        loss_ref[...] = jnp.zeros_like(loss_ref)

    # New row tile: zero the per-row denominator accumulator.
    @pl.when(j == 0)
    def _():
        denom_acc[...] = jnp.zeros_like(denom_acc)

    # Pre-normalize rows (N*D work); fold 1/T into the LHS so the matmul
    # directly produces sim / T.
    zr = zr_ref[...].astype(jnp.float32)
    zc = zc_ref[...].astype(jnp.float32)
    zr_hat = zr / jnp.sqrt(jnp.maximum(jnp.sum(zr * zr, axis=-1, keepdims=True), _EPS_SQ))
    zc_hat = zc / jnp.sqrt(jnp.maximum(jnp.sum(zc * zc, axis=-1, keepdims=True), _EPS_SQ))
    zr_s = zr_hat * inv_temp                                   # rows pre-scaled by 1/T

    if use_bf16:
        lhs, rhs = zr_s.astype(jnp.bfloat16), zc_hat.astype(jnp.bfloat16)
    else:
        lhs, rhs = zr_s, zc_hat
    # Contract on dim 1 of both operands: the MXU consumes the RHS transposed
    # natively, no z.T materialization.
    sim_s = lax.dot_general(lhs, rhs, (((1,), (1,)), ((), ())),
                            preferred_element_type=jnp.float32)  # (TM, TK) = sim / T

    # No negatives mask: sum every column now, subtract the diagonal at the end.
    # NOTE: exp(sim/T) without max-subtraction is safe since |sim| <= 1 (f32
    # overflows only for temperature below ~0.012).
    denom_acc[...] += jnp.sum(jnp.exp(sim_s), axis=1, keepdims=True)

    # Last column tile for this row tile: positives, diagonal fix-up, loss.
    @pl.when(j == nj - 1)
    def _():
        zp = zp_ref[...].astype(jnp.float32)
        zp_hat = zp / jnp.sqrt(jnp.maximum(jnp.sum(zp * zp, axis=-1, keepdims=True), _EPS_SQ))
        if partner_shift:  # only nonzero when a single row tile spans both halves
            zp_hat = pltpu.roll(zp_hat, shift=partner_shift, axis=0)
        # positives / T == sim[k, (k + B) % N] / T, via N*D work (no NxN mask).
        pos_s = jnp.sum(zr_s * zp_hat, axis=-1, keepdims=True)          # (TM, 1)
        # Diagonal of sim / T (== 1/T except for norm-clamped rows).
        self_s = jnp.sum(zr_s * zr_hat, axis=-1, keepdims=True)         # (TM, 1)
        denom = denom_acc[...] - jnp.exp(self_s)
        loss_rows = jnp.log(denom) - pos_s        # = -log(exp(pos/T) / denom)
        loss_ref[...] += jnp.sum(loss_rows, keepdims=True)


def _pick_row_tile(batch_size, n):
    # Row tile must divide batch_size (so each tile's positive partners form a
    # whole aligned block) and be a multiple of 8 sublanes.  Fallback: one tile.
    for t in (256, 128, 64, 32, 16, 8):
        if batch_size % t == 0:
            return t
    return n


def _pick_col_tile(n):
    for t in (512, 256, 128, 64, 32, 16, 8):
        if n % t == 0:
            return t
    return n


def contrastive_loss(z_i, z_j, temperature=0.5, *, use_bf16_matmul=False):
    """NT-Xent contrastive loss, matching ContrastiveLoss.forward semantics."""
    assert z_i.shape == z_j.shape and z_i.ndim == 2
    batch_size, d = z_i.shape
    n = 2 * batch_size

    z = jnp.concatenate([z_i, z_j], axis=0).astype(jnp.float32)   # (N, D), glue
    # Zero-pad features to a multiple of 128 lanes (does not change norms/dots).
    d_pad = ((d + 127) // 128) * 128
    if d_pad != d:
        z = jnp.pad(z, ((0, 0), (0, d_pad - d)))

    tm = _pick_row_tile(batch_size, n)
    tk = _pick_col_tile(n)
    nrt = n // tm
    partner_block = (batch_size // tm) % nrt          # block holding rows (k + B) % N
    partner_shift = (tm - (batch_size % tm)) % tm     # intra-block roll (0 unless tm == n)

    kernel = functools.partial(
        _ntxent_kernel,
        inv_temp=float(1.0 / temperature),
        partner_shift=partner_shift,
        use_bf16=use_bf16_matmul,
    )

    out = pl.pallas_call(
        kernel,
        out_shape=jax.ShapeDtypeStruct((1, 1), jnp.float32),
        grid_spec=pltpu.PrefetchScalarGridSpec(
            num_scalar_prefetch=0,
            grid=(nrt, n // tk),
            in_specs=[
                pl.BlockSpec((tm, d_pad), lambda i, j: (i, 0)),   # query row tile
                pl.BlockSpec((tk, d_pad), lambda i, j: (j, 0)),   # key column tile
                pl.BlockSpec((tm, d_pad),
                             lambda i, j: ((i + partner_block) % nrt, 0)),  # positive partners
            ],
            out_specs=pl.BlockSpec((1, 1), lambda i, j: (0, 0)),  # resident scalar accumulator
            scratch_shapes=[pltpu.VMEM((tm, 1), jnp.float32)],    # per-row denominator
        ),
        compiler_params=pltpu.CompilerParams(
            # Both grid axes reduce into the scalar output / per-row denominator,
            # so both are "arbitrary" (a parallel row axis would race the shared
            # scalar accumulator across v7x's two TensorCores).
            # TODO(synk): emit per-row-tile partials to enable megacore row sharding.
            dimension_semantics=("arbitrary", "arbitrary"),
        ),
    )(z, z, z)
    return out[0, 0] / jnp.float32(n)


def _reference_loss(z_i, z_j, temperature=0.5):
    """Pure-JAX reference mirroring the PyTorch module, for a sanity check."""
    z = jnp.concatenate([z_i, z_j], axis=0).astype(jnp.float32)
    n = z.shape[0]
    b = n // 2
    dots = z @ z.T
    nrm = jnp.linalg.norm(z, axis=-1, keepdims=True)
    sim = dots / jnp.maximum(nrm * nrm.T, 1e-8)
    sim_ij = jnp.diagonal(sim, offset=b)
    sim_ji = jnp.diagonal(sim, offset=-b)
    positives = jnp.concatenate([sim_ij, sim_ji], axis=0)
    nominator = jnp.exp(positives / temperature)
    neg_mask = 1.0 - jnp.eye(n, dtype=jnp.float32)
    denominator = jnp.sum(neg_mask * jnp.exp(sim / temperature), axis=1)
    loss_partial = -jnp.log(nominator / denominator)
    return jnp.sum(loss_partial) / n


if __name__ == "__main__":
    batch_size = 8
    hidden = 32
    temperature = 0.5  # deterministic "buffer" value from __init__

    key = jax.random.PRNGKey(0)
    k1, k2 = jax.random.split(key)
    z_i = jax.random.normal(k1, (batch_size, hidden), dtype=jnp.float32)
    z_j = jax.random.normal(k2, (batch_size, hidden), dtype=jnp.float32)

    loss = contrastive_loss(z_i, z_j, temperature)
    jax.block_until_ready(loss)

    ref = _reference_loss(z_i, z_j, temperature)
    # Kernel normalizes rows before the matmul (reference divides after), so
    # allow a small rounding-order margin.
    assert jnp.allclose(loss, ref, rtol=1e-4, atol=1e-4), (loss, ref)

    print("KERNEL_OK")
</pallas_src>

<mosaic_0001>
module attributes {stable_mosaic.version = 11 : i64} {
  func.func @_ntxent_kernel(%arg0: i32, %arg1: i32, %arg2: memref<8x128xf32, #tpu.memory_space<vmem>>, %arg3: memref<16x128xf32, #tpu.memory_space<vmem>>, %arg4: memref<8x128xf32, #tpu.memory_space<vmem>>, %arg5: memref<1x1xf32, #tpu.memory_space<vmem>>, %arg6: memref<8x1xf32, #tpu.memory_space<vmem>>) attributes {dimension_semantics = [#tpu.dimension_semantics<arbitrary>, #tpu.dimension_semantics<arbitrary>], iteration_bounds = array<i64: 2, 1>, scalar_prefetch = 0 : i64, scratch_operands = 1 : i64, tpu.core_type = #tpu.core_type<tc>, window_params = [{transform_indices = @transform_0, window_bounds = array<i64: 8, 128>}, {transform_indices = @transform_1, window_bounds = array<i64: 16, 128>}, {transform_indices = @transform_2, window_bounds = array<i64: 8, 128>}, {pipeline_mode = #tpu.pipeline_mode<synchronous>, transform_indices = @transform_3, window_bounds = array<i64: 1, 1>}]} {
    %c0_i32 = arith.constant 0 : i32
    %0 = arith.cmpi eq, %arg0, %c0_i32 : i32
    %c0_i32_0 = arith.constant 0 : i32
    %1 = arith.cmpi eq, %arg1, %c0_i32_0 : i32
    %2 = arith.andi %0, %1 : i1
    %3 = arith.extui %2 : i1 to i32
    %c0_i32_1 = arith.constant 0 : i32
    %4 = arith.cmpi ne, %3, %c0_i32_1 : i32
    scf.if %4 {
      %cst_19 = arith.constant 0.000000e+00 : f32
      %38 = vector.broadcast %cst_19 : f32 to vector<1x1xf32>
      %c0_20 = arith.constant 0 : index
      %c0_21 = arith.constant 0 : index
      %39 = vector.load %arg5[%c0_20, %c0_21] : memref<1x1xf32, #tpu.memory_space<vmem>>, vector<1x1xf32>
      tpu.vector_store %arg5[%c0_20, %c0_21], %38 {strides = array<i32>} : memref<1x1xf32, #tpu.memory_space<vmem>>, vector<1x1xf32>,
    } else {
    }
    %c0_i32_2 = arith.constant 0 : i32
    %5 = arith.cmpi eq, %arg1, %c0_i32_2 : i32
    %6 = arith.extui %5 : i1 to i32
    %c0_i32_3 = arith.constant 0 : i32
    %7 = arith.cmpi ne, %6, %c0_i32_3 : i32
    scf.if %7 {
      %cst_19 = arith.constant 0.000000e+00 : f32
      %38 = vector.broadcast %cst_19 : f32 to vector<8x1xf32>
      %c0_20 = arith.constant 0 : index
      %c0_21 = arith.constant 0 : index
      %39 = vector.load %arg6[%c0_20, %c0_21] : memref<8x1xf32, #tpu.memory_space<vmem>>, vector<8x1xf32>
      tpu.vector_store %arg6[%c0_20, %c0_21], %38 {strides = array<i32>} : memref<8x1xf32, #tpu.memory_space<vmem>>, vector<8x1xf32>,
    } else {
    }
    %c0 = arith.constant 0 : index
    %c0_4 = arith.constant 0 : index
    %8 = vector.load %arg2[%c0, %c0_4] : memref<8x128xf32, #tpu.memory_space<vmem>>, vector<8x128xf32>
    %c0_5 = arith.constant 0 : index
    %c0_6 = arith.constant 0 : index
    %9 = vector.load %arg3[%c0_5, %c0_6] : memref<16x128xf32, #tpu.memory_space<vmem>>, vector<16x128xf32>
    %10 = arith.mulf %8, %8 : vector<8x128xf32>
    %cst = arith.constant dense<0.000000e+00> : vector<8xf32>
    %11 = vector.multi_reduction <add>, %10, %cst [1] : vector<8x128xf32> to vector<8xf32>
    %12 = vector.shape_cast %11 : vector<8xf32> to vector<8x1xf32>
    %cst_7 = arith.constant 1.000000e-16 : f32
    %13 = vector.broadcast %cst_7 : f32 to vector<8x1xf32>
    %14 = arith.maximumf %12, %13 : vector<8x1xf32>
    %15 = math.sqrt %14 : vector<8x1xf32>
    %16 = vector.broadcast %15 : vector<8x1xf32> to vector<8x128xf32>
    %17 = arith.divf %8, %16 : vector<8x128xf32>
    %18 = arith.mulf %9, %9 : vector<16x128xf32>
    %cst_8 = arith.constant dense<0.000000e+00> : vector<16xf32>
    %19 = vector.multi_reduction <add>, %18, %cst_8 [1] : vector<16x128xf32> to vector<16xf32>
    %20 = vector.shape_cast %19 : vector<16xf32> to vector<16x1xf32>
    %cst_9 = arith.constant 1.000000e-16 : f32
    %21 = vector.broadcast %cst_9 : f32 to vector<16x1xf32>
    %22 = arith.maximumf %20, %21 : vector<16x1xf32>
    %23 = math.sqrt %22 : vector<16x1xf32>
    %24 = vector.broadcast %23 : vector<16x1xf32> to vector<16x128xf32>
    %25 = arith.divf %9, %24 : vector<16x128xf32>
    %cst_10 = arith.constant 2.000000e+00 : f32
    %26 = vector.broadcast %cst_10 : f32 to vector<8x128xf32>
    %27 = arith.mulf %17, %26 : vector<8x128xf32>
    %cst_11 = arith.constant dense<0.000000e+00> : vector<8x16xf32>
    %28 = tpu.matmul %27, %25, %cst_11 {dimension_numbers = #tpu.dot_dimension_numbers<[1], [1], [0], [0], [0, 0, 1, 0], [], []>} : vector<8x128xf32>, vector<16x128xf32>, vector<8x16xf32> -> vector<8x16xf32>
    %c0_12 = arith.constant 0 : index
    %c0_13 = arith.constant 0 : index
    %29 = vector.load %arg6[%c0_12, %c0_13] : memref<8x1xf32, #tpu.memory_space<vmem>>, vector<8x1xf32>
    %30 = math.exp %28 : vector<8x16xf32>
    %cst_14 = arith.constant dense<0.000000e+00> : vector<8xf32>
    %31 = vector.multi_reduction <add>, %30, %cst_14 [1] : vector<8x16xf32> to vector<8xf32>
    %32 = vector.shape_cast %31 : vector<8xf32> to vector<8x1xf32>
    %33 = arith.addf %29, %32 : vector<8x1xf32>
    %c0_15 = arith.constant 0 : index
    %c0_16 = arith.constant 0 : index
    %34 = vector.load %arg6[%c0_15, %c0_16] : memref<8x1xf32, #tpu.memory_space<vmem>>, vector<8x1xf32>
    tpu.vector_store %arg6[%c0_15, %c0_16], %33 {strides = array<i32>} : memref<8x1xf32, #tpu.memory_space<vmem>>, vector<8x1xf32>,
    %c0_i32_17 = arith.constant 0 : i32
    %35 = arith.cmpi eq, %arg1, %c0_i32_17 : i32
    %36 = arith.extui %35 : i1 to i32
    %c0_i32_18 = arith.constant 0 : i32
    %37 = arith.cmpi ne, %36, %c0_i32_18 : i32
    scf.if %37 {
      %c0_19 = arith.constant 0 : index
      %c0_20 = arith.constant 0 : index
      %38 = vector.load %arg4[%c0_19, %c0_20] : memref<8x128xf32, #tpu.memory_space<vmem>>, vector<8x128xf32>
      %39 = arith.mulf %38, %38 : vector<8x128xf32>
      %cst_21 = arith.constant dense<0.000000e+00> : vector<8xf32>
      %40 = vector.multi_reduction <add>, %39, %cst_21 [1] : vector<8x128xf32> to vector<8xf32>
      %41 = vector.shape_cast %40 : vector<8xf32> to vector<8x1xf32>
      %cst_22 = arith.constant 1.000000e-16 : f32
      %42 = vector.broadcast %cst_22 : f32 to vector<8x1xf32>
      %43 = arith.maximumf %41, %42 : vector<8x1xf32>
      %44 = math.sqrt %43 : vector<8x1xf32>
      %45 = vector.broadcast %44 : vector<8x1xf32> to vector<8x128xf32>
      %46 = arith.divf %38, %45 : vector<8x128xf32>
      %47 = arith.mulf %27, %46 : vector<8x128xf32>
      %cst_23 = arith.constant dense<0.000000e+00> : vector<8xf32>
      %48 = vector.multi_reduction <add>, %47, %cst_23 [1] : vector<8x128xf32> to vector<8xf32>
      %49 = vector.shape_cast %48 : vector<8xf32> to vector<8x1xf32>
      %50 = arith.mulf %27, %17 : vector<8x128xf32>
      %cst_24 = arith.constant dense<0.000000e+00> : vector<8xf32>
      %51 = vector.multi_reduction <add>, %50, %cst_24 [1] : vector<8x128xf32> to vector<8xf32>
      %52 = vector.shape_cast %51 : vector<8xf32> to vector<8x1xf32>
      %c0_25 = arith.constant 0 : index
      %c0_26 = arith.constant 0 : index
      %53 = vector.load %arg6[%c0_25, %c0_26] : memref<8x1xf32, #tpu.memory_space<vmem>>, vector<8x1xf32>
      %54 = math.exp %52 : vector<8x1xf32>
      %55 = arith.subf %53, %54 : vector<8x1xf32>
      %56 = math.log %55 : vector<8x1xf32>
      %57 = arith.subf %56, %49 : vector<8x1xf32>
      %c0_27 = arith.constant 0 : index
      %c0_28 = arith.constant 0 : index
      %58 = vector.load %arg5[%c0_27, %c0_28] : memref<1x1xf32, #tpu.memory_space<vmem>>, vector<1x1xf32>
      %59 = vector.shape_cast %57 : vector<8x1xf32> to vector<1x8x1xf32>
      %cst_29 = arith.constant dense<0.000000e+00> : vector<1xf32>
      %60 = vector.multi_reduction <add>, %59, %cst_29 [1, 2] : vector<1x8x1xf32> to vector<1xf32>
      %61 = vector.shape_cast %60 : vector<1xf32> to vector<1x1x1xf32>
      %62 = vector.extract %61[0, 0, 0] : f32 from vector<1x1x1xf32>
      %63 = vector.broadcast %62 : f32 to vector<1x1xf32>
      %64 = arith.addf %58, %63 : vector<1x1xf32>
      %c0_30 = arith.constant 0 : index
      %c0_31 = arith.constant 0 : index
      %65 = vector.load %arg5[%c0_30, %c0_31] : memref<1x1xf32, #tpu.memory_space<vmem>>, vector<1x1xf32>
      tpu.vector_store %arg5[%c0_30, %c0_31], %64 {strides = array<i32>} : memref<1x1xf32, #tpu.memory_space<vmem>>, vector<1x1xf32>,
    } else {
    }
    return
  }
  func.func @transform_0(%arg0: i32, %arg1: i32) -> (i32, i32) {
    %c0_i32 = arith.constant 0 : i32
    %c0_i32_0 = arith.constant 0 : i32
    return %arg0, %c0_i32 : i32, i32
  }
  func.func @transform_1(%arg0: i32, %arg1: i32) -> (i32, i32) {
    %c0_i32 = arith.constant 0 : i32
    %c0_i32_0 = arith.constant 0 : i32
    return %arg1, %c0_i32 : i32, i32
  }
  func.func @transform_2(%arg0: i32, %arg1: i32) -> (i32, i32) {
    %c1_i32 = arith.constant 1 : i32
    %0 = arith.addi %arg0, %c1_i32 : i32
    %c2_i32 = arith.constant 2 : i32
    %c0_i32 = arith.constant 0 : i32
    %1 = arith.cmpi eq, %c2_i32, %c0_i32 : i32
    %c1_i32_0 = arith.constant 1 : i32
    %2 = arith.select %1, %c1_i32_0, %c2_i32 : i32
    %3 = arith.remsi %0, %2 : i32
    %c0_i32_1 = arith.constant 0 : i32
    %4 = arith.cmpi ne, %3, %c0_i32_1 : i32
    %c0_i32_2 = arith.constant 0 : i32
    %5 = arith.cmpi slt, %3, %c0_i32_2 : i32
    %c0_i32_3 = arith.constant 0 : i32
    %6 = arith.cmpi slt, %2, %c0_i32_3 : i32
    %7 = arith.xori %5, %6 : i1
    %8 = arith.andi %7, %4 : i1
    %9 = arith.addi %3, %2 : i32
    %10 = arith.select %8, %9, %3 : i32
    %c0_i32_4 = arith.constant 0 : i32
    %c0_i32_5 = arith.constant 0 : i32
    return %10, %c0_i32_4 : i32, i32
  }
  func.func @transform_3(%arg0: i32, %arg1: i32) -> (i32, i32) {
    %c0_i32 = arith.constant 0 : i32
    %c0_i32_0 = arith.constant 0 : i32
    %c0_i32_1 = arith.constant 0 : i32
    return %c0_i32, %c0_i32_0 : i32, i32
  }
}

</mosaic_0001>

<llo_original>
// kernel: tpu_custom_call.1
$region0: #{tpu_custom_call.1}
  #allocation0 [shape = 'u32[]', space=smem, size = 0x4, offset = 0x4, fixed_abs, tag = 'smem constant byte address 0x4 - core index']
  #allocation1 [shape = 'u32[72,128]{1,0:T(1,128)}', space=vmem, size = 0x9000, scoped, tag = 'internal scratch']
  #allocation2 [shape = 'f32[8,1]{1,0:T(8,128)}', space=vmem, size = 0x1000, scoped, tag = 'scratch operand']
  %s0 = inlined_call_operand.hbm [shape: f32[16,128], index: 0, kind: input, shape index: {}]
  %s1 = inlined_call_operand.hbm [shape: f32[16,128], index: 1, kind: input, shape index: {}]
  %s2 = inlined_call_operand.hbm [shape: f32[16,128], index: 2, kind: input, shape index: {}]
  %s3 = inlined_call_operand.hbm [shape: f32[1,1], index: 3, kind: output, shape index: {}]
  %s4 = sld [smem:[#allocation0]]
  $region69: #{tpu_custom_call.1} parent=0
    _
  %s6 = ssub.s32 1, %s4
  %s7 = scalar_select 0, %s6, %s4
  $region1: #{tpu_custom_call.1} parent=0
    #allocation3 [shape = 'u8[8192]{0}', space=vmem, size = 0x2000, scoped, tag = 'input window, operand 0']
    #allocation4 [shape = 's32[2]{0}', space=sflag, size = 0x8, scoped, tag = 'scoped memory for tpu_custom_call.1']
    #allocation5 [shape = 's32[2]{0}', space=sflag, size = 0x8, scoped, tag = 'scoped memory for tpu_custom_call.1']
    #allocation6 [shape = 'u8[8192]{0}', space=vmem, size = 0x2000, scoped, tag = 'input window, operand 1, single buffered']
    #allocation7 [shape = 's32[1]{0}', space=sflag, size = 0x4, scoped, tag = 'scoped memory for tpu_custom_call.1']
    #allocation8 [shape = 'u8[8192]{0}', space=vmem, size = 0x2000, scoped, tag = 'input window, operand 2']
    #allocation9 [shape = 'u8[512]{0}', space=vmem, size = 0x400, scoped, tag = 'output window, operand 0, single buffered']
    %8 = vsyncpa [#allocation4], 0
    %s9 = scalar_lea.sflag [#allocation4], 1
    %10 = vsyncpa %s9, 0
    %11 = vsyncpa [#allocation7], 0
    %12 = vsyncpa [#allocation5], 0
    loop: start=0, step=1, limit=4
    $region2: #{tpu_custom_call.1} parent=1 // loop_pre_header
      _
    $region3: #{tpu_custom_call.1} parent=1 // loop_header
      %s14 = sphi 0, %s18
      %p15 = scmp.ge.s32.totalorder %s14, 4
      %s21 = sphi 0, %s33
      %s22 = sphi 0, %s29
      %s23 = sphi 0, %s21
      %s24 = sphi 0, %s22
      %s25 = sphi 0, %s23
      %s26 = sphi 0, %s24
      %s36 = sphi 0, %s38
      %s39 = sphi 0, %s36
      %s40 = sphi 0, %s39
      %s56 = sphi 0, %s40
      %s62 = sphi 0, %s64
      %s65 = sphi 0, %s62
      %s66 = sphi 0, %s65
      %s82 = sphi 0, %s66
      %s114 = sphi 0, %s116
      %s117 = sphi 0, %s114
      %s118 = sphi 0, %s117
      %s134 = sphi 0, %s118
      %s138 = sphi 0, %s138
      %s140 = sphi 0, %s138
      %s141 = sphi 0, %s140
      %s155 = sphi 0, %s141
    $region4: #{tpu_custom_call.1} parent=1 // loop_header_branch
      %17 = sbr.rel (%p15) target = $region8
    $region5: #{tpu_custom_call.1} parent=1 // loop_body
      %s19 = ssub.s32 %s14, 1
      %s20 = ssub.s32 %s14, 2
      %s27 = sadd.s32 1, %s22
      %p28 = scmp.ge.s32.totalorder %s27, 1
      %s29 = scalar_select %p28, 0, %s27
      %s30 = sadd.s32 1, %s21
      %s31 = scalar_select %p28, %s30, %s21
      %p32 = scmp.ge.s32.totalorder %s31, 2
      %s33 = scalar_select %p32, 0, %s31
      %s34 = ssub.s32 %s21, %s33
      %p35 = scmp.eq.s32.totalorder %s34, 0
      %s37 = sadd.s32 %s36, 1
      %s38 = scalar_select %p35, %s36, %s37
      %p41 = pneg %p35
      %p42 = scmp.eq.s32.totalorder %s14, 1
      %p43 = por %p41, %p42
      %p44 = scmp.ne.s32.totalorder %s36, %s39
      %p45 = scmp.eq.s32.totalorder %s14, 0
      %p46 = por %p44, %p45
      %p47 = scmp.ne.s32.totalorder %s36, %s39
      %p48 = scmp.eq.s32.totalorder %s19, 1
      %p49 = por %p47, %p48
      %p50 = scmp.ne.s32.totalorder %s39, %s40
      %p51 = scmp.eq.s32.totalorder %s19, 0
      %p52 = por %p50, %p51
      %p53 = scmp.ne.s32.totalorder %s39, %s40
      %p54 = scmp.eq.s32.totalorder %s20, 1
      %p55 = por %p53, %p54
      %p57 = scmp.ne.s32.totalorder %s40, %s56
      %p58 = scmp.eq.s32.totalorder %s20, 0
      %p59 = por %p57, %p58
      %s60 = ssub.s32 %s22, %s29
      %p61 = scmp.eq.s32.totalorder %s60, 0
      %s63 = sadd.s32 %s62, 1
      %s64 = scalar_select %p61, %s62, %s63
      %p67 = pneg %p61
      %p68 = scmp.eq.s32.totalorder %s14, 1
      %p69 = por %p67, %p68
      %p70 = scmp.ne.s32.totalorder %s62, %s65
      %p71 = scmp.eq.s32.totalorder %s14, 0
      %p72 = por %p70, %p71
      %p73 = scmp.ne.s32.totalorder %s62, %s65
      %p74 = scmp.eq.s32.totalorder %s19, 1
      %p75 = por %p73, %p74
      %p76 = scmp.ne.s32.totalorder %s65, %s66
      %p77 = scmp.eq.s32.totalorder %s19, 0
      %p78 = por %p76, %p77
      %p79 = scmp.ne.s32.totalorder %s65, %s66
      %p80 = scmp.eq.s32.totalorder %s20, 1
      %p81 = por %p79, %p80
      %p83 = scmp.ne.s32.totalorder %s66, %s82
      %p84 = scmp.eq.s32.totalorder %s20, 0
      %p85 = por %p83, %p84
      %s86 = sadd.s32 %s21, 1
      %p87 = scmp.lt.s32.totalorder %s86, 0
      %s88 = ssub.s32 0, %s86
      %s89 = scalar_select %p87, %s88, %s86
      %s90 = sand.u32 %s89, 1
      %s91 = ssub.s32 0, %s90
      %s92 = scalar_select %p87, %s91, %s90
      %p93 = scmp.ne.s32.totalorder %s92, 0
      %p94 = scmp.lt.s32.totalorder %s92, 0
      %p95 = pnand %p94, %p93
      %p96 = pneg %p95
      %s97 = sadd.s32 %s92, 2
      %s98 = scalar_select %p96, %s97, %s92
      %s99 = sadd.s32 %s33, 1
      %p100 = scmp.lt.s32.totalorder %s99, 0
      %s101 = ssub.s32 0, %s99
      %s102 = scalar_select %p100, %s101, %s99
      %s103 = sand.u32 %s102, 1
      %s104 = ssub.s32 0, %s103
      %s105 = scalar_select %p100, %s104, %s103
      %p106 = scmp.ne.s32.totalorder %s105, 0
      %p107 = scmp.lt.s32.totalorder %s105, 0
      %p108 = pnand %p107, %p106
      %p109 = pneg %p108
      %s110 = sadd.s32 %s105, 2
      %s111 = scalar_select %p109, %s110, %s105
      %s112 = ssub.s32 %s98, %s111
      %p113 = scmp.eq.s32.totalorder %s112, 0
      %s115 = sadd.s32 %s114, 1
      %s116 = scalar_select %p113, %s114, %s115
      %p119 = pneg %p113
      %p120 = scmp.eq.s32.totalorder %s14, 1
      %p121 = por %p119, %p120
      %p122 = scmp.ne.s32.totalorder %s114, %s117
      %p123 = scmp.eq.s32.totalorder %s14, 0
      %p124 = por %p122, %p123
      %p125 = scmp.ne.s32.totalorder %s114, %s117
      %p126 = scmp.eq.s32.totalorder %s19, 1
      %p127 = por %p125, %p126
      %p128 = scmp.ne.s32.totalorder %s117, %s118
      %p129 = scmp.eq.s32.totalorder %s19, 0
      %p130 = por %p128, %p129
      %p131 = scmp.ne.s32.totalorder %s117, %s118
      %p132 = scmp.eq.s32.totalorder %s20, 1
      %p133 = por %p131, %p132
      %p135 = scmp.ne.s32.totalorder %s118, %s134
      %p136 = scmp.eq.s32.totalorder %s20, 0
      %p137 = por %p135, %p136
      %s139 = sadd.s32 %s138, 1
      %p142 = scmp.eq.s32.totalorder %s14, 1
      %p143 = scmp.ne.s32.totalorder %s138, %s140
      %p144 = scmp.eq.s32.totalorder %s14, 0
      %p145 = por %p143, %p144
      %p146 = scmp.ne.s32.totalorder %s138, %s140
      %p147 = scmp.eq.s32.totalorder %s19, 1
      %p148 = por %p146, %p147
      %p149 = scmp.ne.s32.totalorder %s140, %s141
      %p150 = scmp.eq.s32.totalorder %s19, 0
      %p151 = por %p149, %p150
      %p152 = scmp.ne.s32.totalorder %s140, %s141
      %p153 = scmp.eq.s32.totalorder %s20, 1
      %p154 = por %p152, %p153
      %p156 = scmp.ne.s32.totalorder %s141, %s155
      %p157 = scmp.eq.s32.totalorder %s20, 0
      %p158 = por %p156, %p157
      %p159 = scmp.le.s32.totalorder 1, %s14
      %p160 = scmp.lt.s32.totalorder %s14, 3
      %p161 = pnand %p159, %p160
      %p162 = pneg %p161
      // Predicated region
      $region9: #{tpu_custom_call.1} parent=5 // pred_check
        _
      $region10: #{tpu_custom_call.1} parent=5 // pred_check_branch
        %164 = sbr.rel (%p161) target = $region12
      $region11: #{tpu_custom_call.1} parent=5 // pred_region
        %s165 = ssub.s32 %s14, 1
        // Predicated region
        $region13: #{tpu_custom_call.1} parent=11 // pred_check
          %p166 = pneg %p78
        $region14: #{tpu_custom_call.1} parent=11 // pred_check_branch
          %168 = sbr.rel (%p166) target = $region16
        $region15: #{tpu_custom_call.1} parent=11 // pred_region
          %s169 = smul.u32 2, %s24
          %171 = vsyncadd [#allocation7], 0
          %s172 = smul.addr %s169, 8
          %s173 = scalar_lea.hbm %s1, %s172
          %s174 = sshll.u32 %s173, 4
          %s175 = int_to_ptr.hbm [resolvable:$true] %s174
          %s176 = sshll.u32 [#allocation6], 4
          %s177 = int_to_ptr.vmem [resolvable:$true] %s176
          %182 = dma.hbm_to_vmem [thread:$0]  %s175, 256, %s177, [#allocation7], 128, 128, 8
        $region16: #{tpu_custom_call.1} parent=11 // pred_fallthru
          _
      $region12: #{tpu_custom_call.1} parent=5 // pred_fallthru
        _
      %p183 = scmp.lt.s32.totalorder %s14, 2
      // Predicated region
      $region17: #{tpu_custom_call.1} parent=5 // pred_check
        %p184 = pneg %p183
      $region18: #{tpu_custom_call.1} parent=5 // pred_check_branch
        %186 = sbr.rel (%p184) target = $region20
      $region19: #{tpu_custom_call.1} parent=5 // pred_region
        // Predicated region
        $region21: #{tpu_custom_call.1} parent=19 // pred_check
          %p187 = pneg %p46
        $region22: #{tpu_custom_call.1} parent=19 // pred_check_branch
          %189 = sbr.rel (%p187) target = $region24
        $region23: #{tpu_custom_call.1} parent=19 // pred_region
          %s190 = sand.u32 %s14, 1
          %s191 = scalar_lea.sflag [#allocation4], %s190
          %s192 = sand.u32 %s36, 1
          %s193 = smul.addr %s192, 8
          %s194 = scalar_lea.vmem [#allocation3], %s193
          %196 = vsyncadd %s191, 0
          %s197 = smul.addr %s21, 8
          %s198 = scalar_lea.hbm %s0, %s197
          %s200 = sshll.u32 %s198, 4
          %s201 = int_to_ptr.hbm [resolvable:$true] %s200
          %s202 = sshll.u32 %s194, 4
          %s203 = int_to_ptr.vmem [resolvable:$true] %s202
          %205 = dma.hbm_to_vmem [thread:$0]  %s201, 128, %s203, %s191
        $region24: #{tpu_custom_call.1} parent=19 // pred_fallthru
          _
        // Predicated region
        $region25: #{tpu_custom_call.1} parent=19 // pred_check
          %p206 = pneg %p124
        $region26: #{tpu_custom_call.1} parent=19 // pred_check_branch
          %208 = sbr.rel (%p206) target = $region28
        $region27: #{tpu_custom_call.1} parent=19 // pred_region
          %s209 = sand.u32 %s14, 1
          %s210 = scalar_lea.sflag [#allocation4], %s209
          %s211 = sand.u32 %s114, 1
          %s212 = smul.addr %s211, 8
          %s213 = scalar_lea.vmem [#allocation8], %s212
          %s214 = sadd.s32 %s21, 1
          %p215 = scmp.lt.s32.totalorder %s214, 0
          %s216 = ssub.s32 0, %s214
          %s217 = scalar_select %p215, %s216, %s214
          %s218 = sand.u32 %s217, 1
          %s219 = ssub.s32 0, %s218
          %s220 = scalar_select %p215, %s219, %s218
          %p221 = scmp.ne.s32.totalorder %s220, 0
          %p222 = scmp.lt.s32.totalorder %s220, 0
          %p223 = pnand %p222, %p221
          %p224 = pneg %p223
          %s225 = sadd.s32 %s220, 2
          %s226 = scalar_select %p224, %s225, %s220
          %228 = vsyncadd %s210, 0
          %s229 = smul.addr %s226, 8
          %s230 = scalar_lea.hbm %s2, %s229
          %s232 = sshll.u32 %s230, 4
          %s233 = int_to_ptr.hbm [resolvable:$true] %s232
          %s234 = sshll.u32 %s213, 4
          %s235 = int_to_ptr.vmem [resolvable:$true] %s234
          %237 = dma.hbm_to_vmem [thread:$0]  %s233, 128, %s235, %s210
        $region28: #{tpu_custom_call.1} parent=19 // pred_fallthru
          _
      $region20: #{tpu_custom_call.1} parent=5 // pred_fallthru
        _
      %p238 = scmp.le.s32.totalorder 1, %s14
      %p239 = scmp.lt.s32.totalorder %s14, 3
      %p240 = pnand %p238, %p239
      %p241 = pneg %p240
      // Predicated region
      $region29: #{tpu_custom_call.1} parent=5 // pred_check
        _
      $region30: #{tpu_custom_call.1} parent=5 // pred_check_branch
        %243 = sbr.rel (%p240) target = $region32
      $region31: #{tpu_custom_call.1} parent=5 // pred_region
        %s244 = ssub.s32 %s14, 1
        %s245 = sand.u32 %s19, 1
        %s246 = scalar_lea.sflag [#allocation4], %s245
        %s247 = sand.u32 %s39, 1
        %s248 = smul.addr %s247, 8
        %s249 = scalar_lea.vmem [#allocation3], %s248
        // Predicated region
        $region33: #{tpu_custom_call.1} parent=31 // pred_check
          %p250 = pneg %p52
        $region34: #{tpu_custom_call.1} parent=31 // pred_check_branch
          %252 = sbr.rel (%p250) target = $region36
        $region35: #{tpu_custom_call.1} parent=31 // pred_region
          %254 = dma.done %s246, 128
        $region36: #{tpu_custom_call.1} parent=31 // pred_fallthru
          _
        // Predicated region
        $region37: #{tpu_custom_call.1} parent=31 // pred_check
          %p255 = pneg %p78
        $region38: #{tpu_custom_call.1} parent=31 // pred_check_branch
          %257 = sbr.rel (%p255) target = $region40
        $region39: #{tpu_custom_call.1} parent=31 // pred_region
          %259 = dma.done [#allocation7], 256
        $region40: #{tpu_custom_call.1} parent=31 // pred_fallthru
          _
        %s260 = sand.u32 %s19, 1
        %s261 = scalar_lea.sflag [#allocation4], %s260
        %s262 = sand.u32 %s117, 1
        %s263 = smul.addr %s262, 8
        %s264 = scalar_lea.vmem [#allocation8], %s263
        // Predicated region
        $region41: #{tpu_custom_call.1} parent=31 // pred_check
          %p265 = pneg %p130
        $region42: #{tpu_custom_call.1} parent=31 // pred_check_branch
          %267 = sbr.rel (%p265) target = $region44
        $region43: #{tpu_custom_call.1} parent=31 // pred_region
          %269 = dma.done %s261, 128
        $region44: #{tpu_custom_call.1} parent=31 // pred_fallthru
          _
        %s270 = sand.u32 %s19, 1
        %s271 = scalar_lea.sflag [#allocation4], %s270
        %s272 = sand.u32 %s39, 1
        %s273 = smul.addr %s272, 8
        %s274 = scalar_lea.vmem [#allocation3], %s273
        %p275 = pneg %p52
        %p276 = pneg %p49
        %p277 = pneg %p78
        %p278 = pneg %p75
        %s279 = sand.u32 %s19, 1
        %s280 = scalar_lea.sflag [#allocation4], %s279
        %s281 = sand.u32 %s117, 1
        %s282 = smul.addr %s281, 8
        %s283 = scalar_lea.vmem [#allocation8], %s282
        %p284 = pneg %p130
        %p285 = pneg %p127
        %p286 = pneg %p151
        %p287 = pneg %p148
        %s288 = smul.u32 2, %s24
        %s289 = sadd.s32 %s23, 1
        %p290 = scmp.lt.s32.totalorder %s289, 0
        %s291 = ssub.s32 0, %s289
        %s292 = scalar_select %p290, %s291, %s289
        %s293 = sand.u32 %s292, 1
        %s294 = ssub.s32 0, %s293
        %s295 = scalar_select %p290, %s294, %s293
        %p296 = scmp.ne.s32.totalorder %s295, 0
        %p297 = scmp.lt.s32.totalorder %s295, 0
        %p298 = pnand %p297, %p296
        %p299 = pneg %p298
        %s300 = sadd.s32 %s295, 2
        %s301 = scalar_select %p299, %s300, %s295
        %p302 = scmp.eq.s32.totalorder %s23, 0
        %p303 = scmp.eq.s32.totalorder %s24, 0
        %p304 = pnand %p302, %p303
        %p305 = pneg %p304
        // Predicated region
        $region45: #{tpu_custom_call.1} parent=31 // pred_check
          _
        $region46: #{tpu_custom_call.1} parent=31 // pred_check_branch
          %307 = sbr.rel (%p304) target = $region48
        $region47: #{tpu_custom_call.1} parent=31 // pred_region
          %vm308 = vcmask 0
          %309 = vst.msk [vmem:[#allocation9] sm:$0x1] %vm308, 0.0
        $region48: #{tpu_custom_call.1} parent=31 // pred_fallthru
          _
        // Predicated region
        $region49: #{tpu_custom_call.1} parent=31 // pred_check
          %p310 = pneg %p303
        $region50: #{tpu_custom_call.1} parent=31 // pred_check_branch
          %312 = sbr.rel (%p310) target = $region52
        $region51: #{tpu_custom_call.1} parent=31 // pred_region
          %vm313 = vcmask 7168
          %314 = vst.msk [vmem:[#allocation2] sm:$0xff] %vm313, 0.0
        $region52: #{tpu_custom_call.1} parent=31 // pred_fallthru
          _
        %v315 = vld [vmem:[%s249] sm:$0xff]
        %v316 = vld [vmem:[#allocation6] sm:$0xff]
        %v317 = vld [vmem:[#allocation6 + $0x8] sm:$0xff]
        %v318 = vmul.f32 %v315, %v315
        %319 = vadd.xlane.f32.xlu0 %v318
        %v320 = vpop.xlane.xlu0 %319
        %v321 = vmax.f32 %v320, 1e-16
        %v322 = vrsqrt.pop %v321
        %v323 = vmul.f32 %v322, %v321
        %v324 = vmul.f32 %v323, %v322
        %v325 = vmul.f32 0.5, %v324
        %v326 = vsub.f32 1.5, %v325
        %v327 = vmul.f32 %v322, %v326
        %v328 = vmul.f32 %v321, %v327
        %vm329 = vcmp.eq.f32.partialorder %v321, inf
        %v330 = vsel %vm329, %v321, %v328
        %vm331 = vcmp.eq.f32.partialorder %v321, 0.0
        %v332 = vand.u32 %v321, 2147483648
        %v333 = vsel %vm331, %v332, %v330
        %v334 = vrcp.pop %v333
        %v335 = vmul.f32 %v333, %v334
        %v336 = vsub.f32 1.0, %v335
        %v337 = vmul.f32 %v334, %v336
        %v338 = vadd.f32 %v334, %v337
        %vm339 = vweird.f32 %v333
        %vm340 = vweird.f32 %v334
        %vm341 = vmor %vm339, %vm340
        %v342 = vsel %vm341, %v334, %v338
        %v343 = vand.u32 2147483647, %v333
        %vm344 = vcmp.eq.f32.partialorder %v343, 8.507059e+37
        %v345 = vand.u32 %v333, 2147483648
        %v346 = vor.u32 1.1754944e-38, %v345
        %v347 = vsel %vm344, %v346, %v342
        %v348 = vmul.f32 %v315, %v347
        %v349 = vmul.f32 %v316, %v316
        %v350 = vmul.f32 %v317, %v317
        %351 = vadd.xlane.f32.xlu0 %v349
        %v352 = vpop.xlane.xlu0 %351
        %353 = vadd.xlane.f32.xlu0 %v350
        %v354 = vpop.xlane.xlu0 %353
        %v355 = vmax.f32 %v352, 1e-16
        %v356 = vmax.f32 %v354, 1e-16
        %v357 = vrsqrt.pop %v355
        %v358 = vmul.f32 %v357, %v355
        %v359 = vmul.f32 %v358, %v357
        %v360 = vmul.f32 0.5, %v359
        %v361 = vsub.f32 1.5, %v360
        %v362 = vmul.f32 %v357, %v361
        %v363 = vmul.f32 %v355, %v362
        %vm364 = vcmp.eq.f32.partialorder %v355, inf
        %v365 = vsel %vm364, %v355, %v363
        %vm366 = vcmp.eq.f32.partialorder %v355, 0.0
        %v367 = vand.u32 %v355, 2147483648
        %v368 = vsel %vm366, %v367, %v365
        %v369 = vrsqrt.pop %v356
        %v370 = vmul.f32 %v369, %v356
        %v371 = vmul.f32 %v370, %v369
        %v372 = vmul.f32 0.5, %v371
        %v373 = vsub.f32 1.5, %v372
        %v374 = vmul.f32 %v369, %v373
        %v375 = vmul.f32 %v356, %v374
        %vm376 = vcmp.eq.f32.partialorder %v356, inf
        %v377 = vsel %vm376, %v356, %v375
        %vm378 = vcmp.eq.f32.partialorder %v356, 0.0
        %v379 = vand.u32 %v356, 2147483648
        %v380 = vsel %vm378, %v379, %v377
        %v381 = vrcp.pop %v368
        %v382 = vmul.f32 %v368, %v381
        %v383 = vsub.f32 1.0, %v382
        %v384 = vmul.f32 %v381, %v383
        %v385 = vadd.f32 %v381, %v384
        %vm386 = vweird.f32 %v368
        %vm387 = vweird.f32 %v381
        %vm388 = vmor %vm386, %vm387
        %v389 = vsel %vm388, %v381, %v385
        %v390 = vand.u32 2147483647, %v368
        %vm391 = vcmp.eq.f32.partialorder %v390, 8.507059e+37
        %v392 = vand.u32 %v368, 2147483648
        %v393 = vor.u32 1.1754944e-38, %v392
        %v394 = vsel %vm391, %v393, %v389
        %v395 = vmul.f32 %v316, %v394
        %v396 = vrcp.pop %v380
        %v397 = vmul.f32 %v380, %v396
        %v398 = vsub.f32 1.0, %v397
        %v399 = vmul.f32 %v396, %v398
        %v400 = vadd.f32 %v396, %v399
        %vm401 = vweird.f32 %v380
        %vm402 = vweird.f32 %v396
        %vm403 = vmor %vm401, %vm402
        %v404 = vsel %vm403, %v396, %v400
        %v405 = vand.u32 2147483647, %v380
        %vm406 = vcmp.eq.f32.partialorder %v405, 8.507059e+37
        %v407 = vand.u32 %v380, 2147483648
        %v408 = vor.u32 1.1754944e-38, %v407
        %v409 = vsel %vm406, %v408, %v404
        %v410 = vmul.f32 %v317, %v409
        %v411 = vmul.f32 %v348, 2.0
        %412 = vmatpush.xpose.msra.mxu0 0.0
        %413 = vmatpush.xpose.msra.mxu0 0.0
        %414 = vmatpush.xpose.msra.mxu0 0.0
        %415 = vmatpush.xpose.msra.mxu0 0.0
        %416 = vmatpush.xpose.msra.mxu0 0.0
        %417 = vmatpush.xpose.msra.mxu0 0.0
        %418 = vmatpush.xpose.msra.mxu0 0.0
        %419 = vmatpush.xpose.msra.mxu0 0.0
        %420 = vmatpush.xpose.msra.mxu0 0.0
        %421 = vmatpush.xpose.msra.mxu0 0.0
        %422 = vmatpush.xpose.msra.mxu0 0.0
        %423 = vmatpush.xpose.msra.mxu0 0.0
        %424 = vmatpush.xpose.msra.mxu0 0.0
        %425 = vmatpush.xpose.msra.mxu0 0.0
        %426 = vmatpush.xpose.msra.mxu0 %v410
        %427 = vmatpush.xpose.msra.mxu0 %v395
        %428 = vmatmul.f32.gmra.mxu0 %v411
        %v429 = vpop.f32.mrf.mxu0
        %v430 = vadd.f32 0.0, %v429
        %431 = vdwg.mxu0
        %v432 = vld [vmem:[#allocation2] sm:$0xff]
        %v433 = vmul.f32 %v430, 1.442695
        %v434 = vpow.pop %v433
        %vm435 = vcmask 130048
        %v436 = vsel %vm435, %v434, 0.0
        %437 = vadd.xlane.f32.xlu0 %v436
        %v438 = vpop.xlane.xlu0 %437
        %v439 = vadd.f32 %v432, %v438
        %vm440 = vcmask 7168
        %441 = vst.msk [vmem:[#allocation2] sm:$0xff] %vm440, %v439
        // Predicated region
        $region53: #{tpu_custom_call.1} parent=31 // pred_check
          %p442 = pneg %p303
        $region54: #{tpu_custom_call.1} parent=31 // pred_check_branch
          %444 = sbr.rel (%p442) target = $region56
        $region55: #{tpu_custom_call.1} parent=31 // pred_region
          %v445 = vld [vmem:[%s264] sm:$0xff]
          %v446 = vmul.f32 %v445, %v445
          %447 = vadd.xlane.f32.xlu0 %v446
          %v448 = vpop.xlane.xlu0 %447
          %v449 = vmax.f32 %v448, 1e-16
          %v450 = vrsqrt.pop %v449
          %v451 = vmul.f32 %v450, %v449
          %v452 = vmul.f32 %v451, %v450
          %v453 = vmul.f32 0.5, %v452
          %v454 = vsub.f32 1.5, %v453
          %v455 = vmul.f32 %v450, %v454
          %v456 = vmul.f32 %v449, %v455
          %vm457 = vcmp.eq.f32.partialorder %v449, inf
          %v458 = vsel %vm457, %v449, %v456
          %vm459 = vcmp.eq.f32.partialorder %v449, 0.0
          %v460 = vand.u32 %v449, 2147483648
          %v461 = vsel %vm459, %v460, %v458
          %v462 = vrcp.pop %v461
          %v463 = vmul.f32 %v461, %v462
          %v464 = vsub.f32 1.0, %v463
          %v465 = vmul.f32 %v462, %v464
          %v466 = vadd.f32 %v462, %v465
          %vm467 = vweird.f32 %v461
          %vm468 = vweird.f32 %v462
          %vm469 = vmor %vm467, %vm468
          %v470 = vsel %vm469, %v462, %v466
          %v471 = vand.u32 2147483647, %v461
          %vm472 = vcmp.eq.f32.partialorder %v471, 8.507059e+37
          %v473 = vand.u32 %v461, 2147483648
          %v474 = vor.u32 1.1754944e-38, %v473
          %v475 = vsel %vm472, %v474, %v470
          %v476 = vmul.f32 %v445, %v475
          %v477 = vmul.f32 %v411, %v476
          %478 = vadd.xlane.f32.xlu0 %v477
          %v479 = vpop.xlane.xlu0 %478
          %v480 = vmul.f32 %v411, %v348
          %481 = vadd.xlane.f32.xlu0 %v480
          %v482 = vpop.xlane.xlu0 %481
          %v483 = vld [vmem:[#allocation2] sm:$0xff]
          %v484 = vmul.f32 %v482, 1.442695
          %v485 = vpow.pop %v484
          %v486 = vsub.f32 %v483, %v485
          %v487 = vlog2.pop %v486
          %v488 = vmul.f32 %v487, 0.6931472
          %v489 = vsub.f32 %v488, %v479
          %v490 = vld [vmem:[#allocation9] sm:$0x1]
          %v491 = vsel %vm440, %v489, 0.0
          %492 = vadd.xlane.f32.xlu0 %v491
          %v493 = vpop.xlane.xlu0 %492
          %v494 = vrot.slane %v493, 4
          %v495 = vadd.f32 %v493, %v494
          %v496 = vrot.slane %v495, 2
          %v497 = vadd.f32 %v495, %v496
          %v498 = vrot.slane %v497, 1
          %v499 = vadd.f32 %v497, %v498
          %s500 = vtos %v499
          %v501 = vstv %s500
          %v502 = vadd.f32 %v490, %v501
          %vm503 = vcmask 0
          %504 = vst.msk [vmem:[#allocation9] sm:$0x1] %vm503, %v502
        $region56: #{tpu_custom_call.1} parent=31 // pred_fallthru
          _
        // Predicated region
        $region57: #{tpu_custom_call.1} parent=31 // pred_check
          %p505 = pneg %p148
        $region58: #{tpu_custom_call.1} parent=31 // pred_check_branch
          %507 = sbr.rel (%p505) target = $region60
        $region59: #{tpu_custom_call.1} parent=31 // pred_region
          %509 = vsyncadd [#allocation5], 0
          %s511 = sshll.u32 [#allocation9], 4
          %s512 = int_to_ptr.vmem [resolvable:$true] %s511
          %s513 = sshll.u32 %s3, 4
          %s514 = int_to_ptr.hbm [resolvable:$true] %s513
          %516 = dma.vmem_to_hbm [thread:$0]  %s512, 16, %s514, [#allocation5]
        $region60: #{tpu_custom_call.1} parent=31 // pred_fallthru
          _
        // Predicated region
        $region61: #{tpu_custom_call.1} parent=31 // pred_check
          %p517 = pneg %p148
        $region62: #{tpu_custom_call.1} parent=31 // pred_check_branch
          %519 = sbr.rel (%p517) target = $region64
        $region63: #{tpu_custom_call.1} parent=31 // pred_region
          %521 = dma.done [#allocation5], 16
        $region64: #{tpu_custom_call.1} parent=31 // pred_fallthru
          _
      $region32: #{tpu_custom_call.1} parent=5 // pred_fallthru
        _
      %p522 = scmp.le.s32.totalorder 2, %s14
      // Predicated region
      $region65: #{tpu_custom_call.1} parent=5 // pred_check
        %p523 = pneg %p522
      $region66: #{tpu_custom_call.1} parent=5 // pred_check_branch
        %525 = sbr.rel (%p523) target = $region68
      $region67: #{tpu_custom_call.1} parent=5 // pred_region
        %s526 = ssub.s32 %s14, 2
      $region68: #{tpu_custom_call.1} parent=5 // pred_fallthru
        _
    $region6: #{tpu_custom_call.1} parent=1 // loop_footer
      %s18 = sadd.s32 1, %s14
    $region7: #{tpu_custom_call.1} parent=1 // loop_footer_branch
      %13 = sbr.rel target = $region3
    $region8: #{tpu_custom_call.1} parent=1 // loop_exit
      _
    %527 = vsyncpa [#allocation4], 1
    %s528 = scalar_lea.sflag [#allocation4], 1
    %529 = vsyncpa %s528, 1
    %530 = vsyncpa [#allocation7], 1
    %531 = vsyncpa [#allocation5], 1
    %s532 = scalar_lea.sflag [#allocation5], 1
    %533 = vsyncpa %s532, 1

</llo_original>
